<compile_context>
chip_gen: v6e
topology: v6e:2x2x1
jax: 0.10.0
libtpu: 0.0.40
codegen_flags: <defaults>
</compile_context>

<pallas_src>
import functools

import jax
import jax.numpy as jnp
from jax.experimental import pallas as pl
from jax.experimental.pallas import tpu as pltpu

_SUBLANES = 8
_TARGET_BLOCK_ELEMS = 256 * 1024   # ~1 MiB f32 per input per grid step
_MIN_GRID_STEPS = 8                # pipeline depth / v7x megacore balance


def _choose_tile_b(batch, n_classes, min_itemsize):
    """Rows per grid step: ~1 MiB/input blocks, >= 8 grid steps when the batch
    allows, sublane-aligned (16 rows when any input is sub-32-bit, else 8)."""
    mult = 16 if min_itemsize < 4 else _SUBLANES
    tile = max(1, _TARGET_BLOCK_ELEMS // max(n_classes, 1))
    tile = min(tile, pl.cdiv(batch, _MIN_GRID_STEPS))
    tile = ((max(tile, 1) + mult - 1) // mult) * mult
    if tile >= batch:
        # Single block covering the whole batch: block == full array dims is
        # always a legal block shape (handles B not a multiple of 8, ragged C).
        return batch
    return tile


def _logit_bce_block_kernel(scores_ref, targets_ref, out_ref, *,
                            tile_b, num_blocks, last_rows):
    """One grid step: stable BCE-with-logits on a (tile_b, C) row-slab.

    Writes a lane-dense (1, 1, C) column-sum partial.  Ragged C is handled by
    Mosaic (block last dim == full C, reductions respect the logical shape).
    Only the last block can contain grid-edge-padded (undefined) rows; those
    are masked with a static row-threshold compare, and the mask is compiled
    out entirely when tile_b divides B.
    """
    x = scores_ref[...].astype(jnp.float32)
    y = targets_ref[...].astype(jnp.float32)

    # Numerically stable BCE with logits: max(x, 0) - x*y + log1p(exp(-|x|))
    per = jnp.maximum(x, 0.0) - x * y + jnp.log1p(jnp.exp(-jnp.abs(x)))
    n_classes = per.shape[1]

    def colsum(v):
        # Sublane (row) reduction only; stays lane-dense at width C.
        return jnp.sum(v, axis=0, keepdims=True).reshape(1, 1, n_classes)

    if last_rows == tile_b:
        # tile_b divides B: every row of every block is valid -> no mask at all.
        out_ref[...] = colsum(per)
    else:
        i = pl.program_id(0)

        @pl.when(i < num_blocks - 1)
        def _():
            out_ref[...] = colsum(per)

        @pl.when(i == num_blocks - 1)
        def _():
            # Mask the undefined grid-edge rows of the final block only.
            row = jax.lax.broadcasted_iota(jnp.int32, (tile_b, 1), 0)
            out_ref[...] = colsum(jnp.where(row < last_rows, per, 0.0))


def logit_bce_loss(scores, targets):
    """Pallas implementation of Pythia's logit_bce loss. Returns shape (1,) f32.

    Accepts any real dtype (f32 / bf16 / ...) for scores and targets.
    """
    assert scores.shape == targets.shape and scores.ndim == 2
    B, C = scores.shape

    min_itemsize = min(scores.dtype.itemsize, targets.dtype.itemsize)
    tile_b = _choose_tile_b(B, C, min_itemsize)
    num_blocks = pl.cdiv(B, tile_b)
    last_rows = B - (num_blocks - 1) * tile_b  # valid rows in the final block

    kernel = functools.partial(
        _logit_bce_block_kernel,
        tile_b=tile_b, num_blocks=num_blocks, last_rows=last_rows,
    )

    partials = pl.pallas_call(
        kernel,
        out_shape=jax.ShapeDtypeStruct((num_blocks, 1, C), jnp.float32),
        grid_spec=pltpu.PrefetchScalarGridSpec(
            num_scalar_prefetch=0,
            grid=(num_blocks,),
            in_specs=[
                pl.BlockSpec((tile_b, C), lambda i: (i, 0)),
                pl.BlockSpec((tile_b, C), lambda i: (i, 0)),
            ],
            out_specs=pl.BlockSpec((1, 1, C), lambda i: (i, 0, 0)),
        ),
        compiler_params=pltpu.CompilerParams(
            # Independent blocks -> truly parallel (megacore-shardable on v7x).
            # ~1 MiB double-buffered blocks fit every generation's default
            # VMEM scope, so no vmem_limit_bytes override is needed.
            dimension_semantics=("parallel",),
        ),
    )(scores, targets)

    # BCEWithLogits(reduction="mean") * C  ==  sum / (B*C) * C  ==  sum / B
    loss = jnp.sum(partials) / jnp.float32(B)
    return jnp.reshape(loss, (1,))


def pythia_loss_forward(sample_list, model_output, *, loss_name="logit_bce"):
    """Mirrors PythiaLoss.forward: compute loss, ensure shape (1,), wrap in dict."""
    # TODO(synk): only the canonical `logit_bce` criterion is implemented; the
    # registry dispatch of arbitrary registered losses has no Pallas equivalent.
    loss = logit_bce_loss(model_output["scores"], sample_list["targets"])
    loss = jnp.reshape(loss, (1,))  # PyTorch: if loss.dim() == 0: loss.view(1)
    key = "{}/{}/{}".format(
        sample_list["dataset_type"], sample_list["dataset_name"], loss_name
    )
    return {key: loss}


def _ref_logit_bce(scores, targets):
    x = scores.astype(jnp.float32)
    y = targets.astype(jnp.float32)
    per = jnp.maximum(x, 0.0) - x * y + jnp.log1p(jnp.exp(-jnp.abs(x)))
    return jnp.mean(per) * x.shape[1]


if __name__ == "__main__":
    key = jax.random.PRNGKey(0)
    k1, k2, k3, k4, k5, k6, k7, k8 = jax.random.split(key, 8)

    # --- Test 1: lane-aligned shape, full PythiaLoss dict path --------------
    B, C = 8, 128
    scores = jax.random.normal(k1, (B, C), dtype=jnp.float32)
    targets = (jax.random.uniform(k2, (B, C)) > 0.5).astype(jnp.float32)
    sample_list = {"targets": targets, "dataset_type": "train", "dataset_name": "vqa2"}
    out = pythia_loss_forward(sample_list, {"scores": scores})
    (loss_val,) = out.values()
    loss_val = jax.block_until_ready(loss_val)
    assert loss_val.shape == (1,)
    assert "train/vqa2/logit_bce" in out
    assert jnp.allclose(loss_val[0], _ref_logit_bce(scores, targets), rtol=1e-5, atol=1e-5)

    # --- Test 2: ragged C and B (single full-array block, lane-tail masking)
    B2, C2 = 6, 100
    s2 = jax.random.normal(k3, (B2, C2), dtype=jnp.float32)
    t2 = (jax.random.uniform(k4, (B2, C2)) > 0.5).astype(jnp.float32)
    l2 = jax.block_until_ready(logit_bce_loss(s2, t2))
    assert jnp.allclose(l2[0], _ref_logit_bce(s2, t2), rtol=1e-5, atol=1e-5)

    # --- Test 3: multi-block grid, even row split (mask compiled out) -------
    B3, C3 = 32, 100   # f32 -> tile_b = 8 -> 4 grid steps, B % tile_b == 0
    s3 = jax.random.normal(k5, (B3, C3), dtype=jnp.float32)
    t3 = (jax.random.uniform(k6, (B3, C3)) > 0.5).astype(jnp.float32)
    l3 = jax.block_until_ready(logit_bce_loss(s3, t3))
    assert jnp.allclose(l3[0], _ref_logit_bce(s3, t3), rtol=1e-5, atol=1e-5)

    # --- Test 4: bf16 scores, partial last block (row-mask path) ------------
    B4, C4 = 40, 100   # bf16 -> tile_b = 16 -> 3 grid steps, last block has 8 valid rows
    s4 = jax.random.normal(k7, (B4, C4), dtype=jnp.bfloat16)
    t4 = (jax.random.uniform(k8, (B4, C4)) > 0.5).astype(jnp.float32)
    l4 = jax.block_until_ready(logit_bce_loss(s4, t4))
    assert jnp.allclose(l4[0], _ref_logit_bce(s4, t4), rtol=1e-4, atol=1e-4)

    print("KERNEL_OK")
</pallas_src>

<mosaic_0001>
module attributes {stable_mosaic.version = 11 : i64} {
  func.func @_logit_bce_block_kernel(%arg0: i32, %arg1: memref<8x128xf32, #tpu.memory_space<vmem>>, %arg2: memref<8x128xf32, #tpu.memory_space<vmem>>, %arg3: memref<1x1x128xf32, #tpu.memory_space<vmem>>) attributes {dimension_semantics = [#tpu.dimension_semantics<parallel>], iteration_bounds = array<i64: 1>, scalar_prefetch = 0 : i64, scratch_operands = 0 : i64, tpu.core_type = #tpu.core_type<tc>, window_params = [{transform_indices = @transform_0, window_bounds = array<i64: 8, 128>}, {transform_indices = @transform_1, window_bounds = array<i64: 8, 128>}, {transform_indices = @transform_2, window_bounds = array<i64: 1, 1, 128>}]} {
    %c0 = arith.constant 0 : index
    %c0_0 = arith.constant 0 : index
    %0 = vector.load %arg1[%c0, %c0_0] : memref<8x128xf32, #tpu.memory_space<vmem>>, vector<8x128xf32>
    %c0_1 = arith.constant 0 : index
    %c0_2 = arith.constant 0 : index
    %1 = vector.load %arg2[%c0_1, %c0_2] : memref<8x128xf32, #tpu.memory_space<vmem>>, vector<8x128xf32>
    %cst = arith.constant 0.000000e+00 : f32
    %2 = vector.broadcast %cst : f32 to vector<8x128xf32>
    %3 = arith.maximumf %0, %2 : vector<8x128xf32>
    %4 = arith.mulf %0, %1 : vector<8x128xf32>
    %5 = arith.subf %3, %4 : vector<8x128xf32>
    %6 = math.absf %0 : vector<8x128xf32>
    %cst_3 = arith.constant 0.000000e+00 : f32
    %7 = vector.broadcast %cst_3 : f32 to vector<8x128xf32>
    %8 = arith.subf %7, %6 : vector<8x128xf32>
    %9 = math.exp %8 : vector<8x128xf32>
    %10 = math.log1p %9 : vector<8x128xf32>
    %11 = arith.addf %5, %10 : vector<8x128xf32>
    %cst_4 = arith.constant dense<0.000000e+00> : vector<128xf32>
    %12 = vector.multi_reduction <add>, %11, %cst_4 [0] : vector<8x128xf32> to vector<128xf32>
    %13 = vector.shape_cast %12 : vector<128xf32> to vector<1x128xf32>
    %14 = vector.shape_cast %13 : vector<1x128xf32> to vector<1x1x128xf32>
    %c0_5 = arith.constant 0 : index
    %c0_6 = arith.constant 0 : index
    %c0_7 = arith.constant 0 : index
    %15 = vector.load %arg3[%c0_5, %c0_6, %c0_7] : memref<1x1x128xf32, #tpu.memory_space<vmem>>, vector<1x1x128xf32>
    tpu.vector_store %arg3[%c0_5, %c0_6, %c0_7], %14 {strides = array<i32>} : memref<1x1x128xf32, #tpu.memory_space<vmem>>, vector<1x1x128xf32>,
    return
  }
  func.func @transform_0(%arg0: i32) -> (i32, i32) {
    %c0_i32 = arith.constant 0 : i32
    %c0_i32_0 = arith.constant 0 : i32
    return %arg0, %c0_i32 : i32, i32
  }
  func.func @transform_1(%arg0: i32) -> (i32, i32) {
    %c0_i32 = arith.constant 0 : i32
    %c0_i32_0 = arith.constant 0 : i32
    return %arg0, %c0_i32 : i32, i32
  }
  func.func @transform_2(%arg0: i32) -> (i32, i32, i32) {
    %c0_i32 = arith.constant 0 : i32
    %c0_i32_0 = arith.constant 0 : i32
    %c0_i32_1 = arith.constant 0 : i32
    return %arg0, %c0_i32, %c0_i32_0 : i32, i32, i32
  }
}

</mosaic_0001>

<llo_original>
// kernel: tpu_custom_call.1
$region0: #{tpu_custom_call.1}
  #allocation0 [shape = 'u32[]', space=smem, size = 0x4, offset = 0x4, fixed_abs, tag = 'smem constant byte address 0x4 - core index']
  #allocation1 [shape = 'u32[144,128]{1,0:T(1,128)}', space=vmem, size = 0x12000, scoped, tag = 'internal scratch']
  %s0 = inlined_call_operand.hbm [shape: f32[8,128], index: 0, kind: input, shape index: {}]
  %s1 = inlined_call_operand.hbm [shape: f32[8,128], index: 1, kind: input, shape index: {}]
  %s2 = inlined_call_operand.hbm [shape: f32[1,1,128], index: 2, kind: output, shape index: {}]
  %s3 = sld [smem:[#allocation0]]
  $region26: #{tpu_custom_call.1} parent=0
    _
  %s5 = ssub.s32 1, %s3
  %s6 = scalar_select 0, %s5, %s3
  $region1: #{tpu_custom_call.1} parent=0
    #allocation2 [shape = 'u8[4096]{0}', space=vmem, size = 0x1000, scoped, tag = 'input window, operand 0, single buffered']
    #allocation3 [shape = 's32[1]{0}', space=sflag, size = 0x4, scoped, tag = 'scoped memory for tpu_custom_call.1']
    #allocation4 [shape = 's32[1]{0}', space=sflag, size = 0x4, scoped, tag = 'scoped memory for tpu_custom_call.1']
    #allocation5 [shape = 'u8[4096]{0}', space=vmem, size = 0x1000, scoped, tag = 'input window, operand 1, single buffered']
    #allocation6 [shape = 's32[1]{0}', space=sflag, size = 0x4, scoped, tag = 'scoped memory for tpu_custom_call.1']
    #allocation7 [shape = 'u8[512]{0}', space=vmem, size = 0x400, scoped, tag = 'output window, operand 0, single buffered']
    %7 = vsyncpa [#allocation3], 0
    %8 = vsyncpa [#allocation6], 0
    %9 = vsyncpa [#allocation4], 0
    // Predicated region
    $region2: #{tpu_custom_call.1} parent=1 // pred_check
      _
    $region3: #{tpu_custom_call.1} parent=1 // pred_check_branch
      %11 = sbr.rel (0) target = $region5
    $region4: #{tpu_custom_call.1} parent=1 // pred_region
      %s13 = ssub.s32 128, 128
      %14 = vsyncadd [#allocation3], %s13
      %s16 = sshll.u32 [#allocation2], 4
      %s17 = int_to_ptr.vmem [resolvable:$true] %s16
      %19 = dma.hbm_to_vmem [thread:$0]  %s0, 128, %s17, [#allocation3]
    $region5: #{tpu_custom_call.1} parent=1 // pred_fallthru
      _
    // Predicated region
    $region6: #{tpu_custom_call.1} parent=1 // pred_check
      _
    $region7: #{tpu_custom_call.1} parent=1 // pred_check_branch
      %21 = sbr.rel (0) target = $region9
    $region8: #{tpu_custom_call.1} parent=1 // pred_region
      %s23 = ssub.s32 128, 128
      %24 = vsyncadd [#allocation6], %s23
      %s26 = sshll.u32 [#allocation5], 4
      %s27 = int_to_ptr.vmem [resolvable:$true] %s26
      %29 = dma.hbm_to_vmem [thread:$0]  %s1, 128, %s27, [#allocation6]
    $region9: #{tpu_custom_call.1} parent=1 // pred_fallthru
      _
    // Predicated region
    $region10: #{tpu_custom_call.1} parent=1 // pred_check
      _
    $region11: #{tpu_custom_call.1} parent=1 // pred_check_branch
      %31 = sbr.rel (0) target = $region13
    $region12: #{tpu_custom_call.1} parent=1 // pred_region
      %32 = dma.done [#allocation3], 128
    $region13: #{tpu_custom_call.1} parent=1 // pred_fallthru
      _
    // Predicated region
    $region14: #{tpu_custom_call.1} parent=1 // pred_check
      _
    $region15: #{tpu_custom_call.1} parent=1 // pred_check_branch
      %34 = sbr.rel (0) target = $region17
    $region16: #{tpu_custom_call.1} parent=1 // pred_region
      %35 = dma.done [#allocation6], 128
    $region17: #{tpu_custom_call.1} parent=1 // pred_fallthru
      _
    %v36 = vld [vmem:[#allocation2] sm:$0xff]
    %v37 = vld [vmem:[#allocation5] sm:$0xff]
    %v38 = vmax.f32 %v36, 0.0
    %v39 = vmul.f32 %v36, %v37
    %v40 = vsub.f32 %v38, %v39
    %v41 = vand.u32 2147483647, %v36
    %v42 = vsub.f32 0.0, %v41
    %v43 = vmul.f32 %v42, 1.442695
    %v44 = vpow.pop %v43
    %v45 = vadd.f32 %v44, 1.0
    %v46 = vlog2.pop %v45
    %v47 = vmul.f32 %v46, 0.6931472
    %v48 = vmul.f32 -0.5, %v44
    %v49 = vadd.f32 %v48, 1.0
    %v50 = vmul.f32 %v49, %v44
    %v51 = vand.u32 2147483647, %v44
    %vm52 = vcmp.lt.f32.partialorder %v51, 0.0004427343
    %v53 = vsel %vm52, %v50, %v47
    %v54 = vadd.f32 %v40, %v53
    %v55 = vrot.slane %v54, 4
    %v56 = vadd.f32 %v54, %v55
    %v57 = vrot.slane %v56, 2
    %v58 = vadd.f32 %v56, %v57
    %v59 = vrot.slane %v58, 1
    %v60 = vadd.f32 %v58, %v59
    %61 = vst [vmem:[#allocation7] sm:$0x1] %v60
    // Predicated region
    $region18: #{tpu_custom_call.1} parent=1 // pred_check
      _
    $region19: #{tpu_custom_call.1} parent=1 // pred_check_branch
      %63 = sbr.rel (0) target = $region21
    $region20: #{tpu_custom_call.1} parent=1 // pred_region
      %s65 = ssub.s32 16, 16
      %66 = vsyncadd [#allocation4], %s65
      %s68 = sshll.u32 [#allocation7], 4
      %s69 = int_to_ptr.vmem [resolvable:$true] %s68
      %71 = dma.vmem_to_hbm [thread:$0]  %s69, 16, %s2, [#allocation4]
    $region21: #{tpu_custom_call.1} parent=1 // pred_fallthru
      _
    // Predicated region
    $region22: #{tpu_custom_call.1} parent=1 // pred_check
      _
    $region23: #{tpu_custom_call.1} parent=1 // pred_check_branch
      %73 = sbr.rel (0) target = $region25
    $region24: #{tpu_custom_call.1} parent=1 // pred_region
      %74 = dma.done [#allocation4], 16
    $region25: #{tpu_custom_call.1} parent=1 // pred_fallthru
      _
    %75 = vsyncpa [#allocation3], 1
    %76 = vsyncpa [#allocation6], 1
    %77 = vsyncpa [#allocation4], 1

</llo_original>
